<compile_context>
chip_gen: v6e
topology: v6e:2x2x1
jax: 0.10.0
libtpu: 0.0.40
codegen_flags: <defaults>
</compile_context>

<pallas_src>
import functools

import numpy as np

import jax
import jax.numpy as jnp
from jax.experimental import pallas as pl
from jax.experimental.pallas import tpu as pltpu


def _fg_masking_kernel(est_ref, gt_ref, out_ref, *, thresh, aggregation_type):
    # est_ref / gt_ref / out_ref: (tile_r, segment_size) VMEM tiles.
    res = est_ref[...].astype(jnp.float32) - gt_ref[...].astype(jnp.float32)

    if aggregation_type == "mean":
        crit = jnp.mean(jnp.abs(res), axis=-1, keepdims=True)
        cutoff = jnp.float32(thresh)
    elif aggregation_type == "max":
        crit = jnp.max(jnp.abs(res), axis=-1, keepdims=True)
        cutoff = jnp.float32(thresh)
    elif aggregation_type == "dBFS":
        # 10*log10(mean(res^2)) > thresh  <=>  mean(res^2) > 10**(thresh/10)
        # (log10 is monotone), so compare in linear power: no EUP log, no
        # -inf handling for silent segments.
        crit = jnp.mean(res * res, axis=-1, keepdims=True)
        cutoff = jnp.float32(10.0 ** (float(thresh) / 10.0))
    else:
        raise ValueError(f"Unsupported aggregation type {aggregation_type!r}")

    mask = (crit > cutoff).astype(jnp.float32)
    out_ref[...] = jnp.broadcast_to(mask, out_ref.shape)


def _round_up(x, m):
    return -(-x // m) * m


def _choose_tile_r(R, segment_size, in_itemsize, row_align, *,
                   max_tile_r=2048, vmem_budget_bytes=24 << 20):
    """Pick a row tile that fits the double-buffered VMEM budget."""
    # Per grid step: 2 inputs + 1 f32 output, each double-buffered by Pallas.
    bytes_per_row = segment_size * (2 * 2 * in_itemsize + 2 * 4)
    cap = max(row_align,
              (vmem_budget_bytes // bytes_per_row) // row_align * row_align)
    tile_r = min(max_tile_r, cap)
    if tile_r >= R:
        # Small problem: aim for >= 2 grid steps (lets Mosaic shard the
        # parallel axis across both v7x TensorCores) without dropping below
        # the sublane alignment.
        half = _round_up(max(1, -(-R // 2)), row_align)
        tile_r = max(row_align, min(tile_r, half))
    return tile_r


def fg_masking(est, gt, *, segment_size, thresh=0.1, aggregation_type="mean",
               probabilistic=False, thresh_std=None, tile_r=None):
    """Pallas implementation of FGMasking.forward (perceptual=False)."""
    B, C, T = est.shape
    assert gt.shape == est.shape
    assert T % segment_size == 0
    num_chunks = T // segment_size
    R = B * C * num_chunks

    if probabilistic:
        # Matches the module: host-side numpy draw of the threshold.
        assert thresh_std is not None
        thresh = float(np.random.normal(loc=thresh, scale=thresh_std))

    # Glue reshapes: (B, C, T) -> (R, segment_size).
    est2 = est.reshape(R, segment_size)
    gt2 = gt.reshape(R, segment_size)

    in_itemsize = est.dtype.itemsize
    # Sublane alignment: 8 rows for f32, 16 for bf16, 32 for int8 inputs.
    row_align = max(8, 32 // max(int(in_itemsize), 1))
    if tile_r is None:
        tile_r = _choose_tile_r(R, segment_size, in_itemsize, row_align)
    else:
        tile_r = max(row_align, _round_up(int(tile_r), row_align))

    # Ragged grid: the last block may extend past R; out-of-bounds rows are
    # never written back, and each row's reduction is independent, so the
    # garbage rows in the padded region are harmless.
    grid = (pl.cdiv(R, tile_r),)

    kernel = functools.partial(
        _fg_masking_kernel, thresh=thresh, aggregation_type=aggregation_type)

    mask2 = pl.pallas_call(
        kernel,
        out_shape=jax.ShapeDtypeStruct((R, segment_size), jnp.float32),
        grid_spec=pltpu.PrefetchScalarGridSpec(
            num_scalar_prefetch=0,
            grid=grid,
            in_specs=[
                pl.BlockSpec((tile_r, segment_size), lambda i: (i, 0)),
                pl.BlockSpec((tile_r, segment_size), lambda i: (i, 0)),
            ],
            out_specs=pl.BlockSpec((tile_r, segment_size), lambda i: (i, 0)),
        ),
        compiler_params=pltpu.CompilerParams(
            dimension_semantics=("parallel",),
            # Tiles are budgeted at <= ~24 MiB double-buffered; raise the
            # scoped limit explicitly (v5e default is only ~16 MiB) while
            # staying well under v7x's 64 MiB physical VMEM.
            vmem_limit_bytes=48 * 1024 * 1024),
    )(est2, gt2)

    # Glue reshape back: (R, segment_size) -> (B, C, T).
    return mask2.reshape(B, C, T)


def _reference(est, gt, *, segment_size, thresh, aggregation_type):
    B, C, T = est.shape
    num_chunks = T // segment_size
    res = (est - gt).reshape(B * C * num_chunks, segment_size)
    if aggregation_type == "mean":
        crit = jnp.mean(jnp.abs(res), axis=1)
    elif aggregation_type == "max":
        crit = jnp.max(jnp.abs(res), axis=1)
    elif aggregation_type == "dBFS":
        crit = 10.0 * jnp.log10(jnp.mean(res * res, axis=1))
    else:
        raise ValueError(aggregation_type)
    mask = (crit > thresh).astype(jnp.float32)
    mask = jnp.broadcast_to(mask[:, None], (B * C * num_chunks, segment_size))
    return mask.reshape(B, C, T)


if __name__ == "__main__":
    # Small shapes consistent with the module: (B, C, T) waveform-like input.
    B, C = 2, 4
    segment_size = 128
    num_chunks = 8
    T = segment_size * num_chunks  # 1024

    key = jax.random.PRNGKey(0)
    k_est, k_gt = jax.random.split(key)
    gt = jax.random.normal(k_gt, (B, C, T), dtype=jnp.float32)
    # est = gt + noise whose scale alternates per chunk so some segments fall
    # above and some below the threshold for every aggregation mode.
    noise = 0.15 * jax.random.normal(k_est, (B, C, T), dtype=jnp.float32)
    scale = jnp.where(jnp.arange(num_chunks) % 2 == 0, 1.0, 0.1)
    noise = (noise.reshape(B, C, num_chunks, segment_size)
             * scale[None, None, :, None]).reshape(B, C, T)
    est = gt + noise

    configs = [("mean", 0.1), ("max", 0.1), ("dBFS", -25.0)]
    for agg, th in configs:
        out = fg_masking(est, gt, segment_size=segment_size, thresh=th,
                         aggregation_type=agg)
        out = jax.block_until_ready(out)
        ref = _reference(est, gt, segment_size=segment_size, thresh=th,
                         aggregation_type=agg)
        assert out.shape == (B, C, T) and out.dtype == jnp.float32
        assert bool(jnp.all(out == ref)), f"mismatch for aggregation={agg}"
        # Sanity: the test exercises both mask values.
        m = float(out.mean())
        assert 0.0 < m < 1.0, f"degenerate mask for aggregation={agg}: {m}"

    print("KERNEL_OK")
</pallas_src>

<mosaic_0001>
module attributes {stable_mosaic.version = 11 : i64} {
  func.func @_fg_masking_kernel(%arg0: i32, %arg1: memref<32x128xf32, #tpu.memory_space<vmem>>, %arg2: memref<32x128xf32, #tpu.memory_space<vmem>>, %arg3: memref<32x128xf32, #tpu.memory_space<vmem>>) attributes {dimension_semantics = [#tpu.dimension_semantics<parallel>], iteration_bounds = array<i64: 2>, scalar_prefetch = 0 : i64, scratch_operands = 0 : i64, tpu.core_type = #tpu.core_type<tc>, window_params = [{transform_indices = @transform_0, window_bounds = array<i64: 32, 128>}, {transform_indices = @transform_1, window_bounds = array<i64: 32, 128>}, {transform_indices = @transform_2, window_bounds = array<i64: 32, 128>}]} {
    %c0 = arith.constant 0 : index
    %c0_0 = arith.constant 0 : index
    %0 = vector.load %arg1[%c0, %c0_0] : memref<32x128xf32, #tpu.memory_space<vmem>>, vector<32x128xf32>
    %c0_1 = arith.constant 0 : index
    %c0_2 = arith.constant 0 : index
    %1 = vector.load %arg2[%c0_1, %c0_2] : memref<32x128xf32, #tpu.memory_space<vmem>>, vector<32x128xf32>
    %2 = arith.subf %0, %1 : vector<32x128xf32>
    %3 = math.absf %2 : vector<32x128xf32>
    %cst = arith.constant dense<0.000000e+00> : vector<32xf32>
    %4 = vector.multi_reduction <add>, %3, %cst [1] : vector<32x128xf32> to vector<32xf32>
    %5 = vector.shape_cast %4 : vector<32xf32> to vector<32x1xf32>
    %cst_3 = arith.constant 1.280000e+02 : f32
    %6 = vector.broadcast %cst_3 : f32 to vector<32x1xf32>
    %7 = arith.divf %5, %6 : vector<32x1xf32>
    %cst_4 = arith.constant 1.000000e-01 : f32
    %8 = vector.broadcast %cst_4 : f32 to vector<32x1xf32>
    %9 = arith.cmpf ogt, %7, %8 : vector<32x1xf32>
    %10 = arith.extui %9 : vector<32x1xi1> to vector<32x1xi32>
    %11 = arith.sitofp %10 : vector<32x1xi32> to vector<32x1xf32>
    %12 = vector.shape_cast %11 : vector<32x1xf32> to vector<32x1xf32>
    %13 = vector.broadcast %12 : vector<32x1xf32> to vector<32x128xf32>
    %c0_5 = arith.constant 0 : index
    %c0_6 = arith.constant 0 : index
    %14 = vector.load %arg3[%c0_5, %c0_6] : memref<32x128xf32, #tpu.memory_space<vmem>>, vector<32x128xf32>
    tpu.vector_store %arg3[%c0_5, %c0_6], %13 {strides = array<i32>} : memref<32x128xf32, #tpu.memory_space<vmem>>, vector<32x128xf32>,
    return
  }
  func.func @transform_0(%arg0: i32) -> (i32, i32) {
    %c0_i32 = arith.constant 0 : i32
    %c0_i32_0 = arith.constant 0 : i32
    return %arg0, %c0_i32 : i32, i32
  }
  func.func @transform_1(%arg0: i32) -> (i32, i32) {
    %c0_i32 = arith.constant 0 : i32
    %c0_i32_0 = arith.constant 0 : i32
    return %arg0, %c0_i32 : i32, i32
  }
  func.func @transform_2(%arg0: i32) -> (i32, i32) {
    %c0_i32 = arith.constant 0 : i32
    %c0_i32_0 = arith.constant 0 : i32
    return %arg0, %c0_i32 : i32, i32
  }
}

</mosaic_0001>

<llo_original>
// kernel: tpu_custom_call.1
$region0: #{tpu_custom_call.1}
  #allocation0 [shape = 'u32[]', space=smem, size = 0x4, offset = 0x4, fixed_abs, tag = 'smem constant byte address 0x4 - core index']
  #allocation1 [shape = 'u32[144,128]{1,0:T(1,128)}', space=vmem, size = 0x12000, scoped, tag = 'internal scratch']
  %s0 = inlined_call_operand.hbm [shape: f32[64,128], index: 0, kind: input, shape index: {}]
  %s1 = inlined_call_operand.hbm [shape: f32[64,128], index: 1, kind: input, shape index: {}]
  %s2 = inlined_call_operand.hbm [shape: f32[64,128], index: 2, kind: output, shape index: {}]
  %s3 = sld [smem:[#allocation0]]
  $region49: #{tpu_custom_call.1} parent=0
    _
  %s5 = ssub.s32 1, %s3
  %s6 = scalar_select 0, %s5, %s3
  $region1: #{tpu_custom_call.1} parent=0
    #allocation2 [shape = 'u8[32768]{0}', space=vmem, size = 0x8000, scoped, tag = 'input window, operand 0']
    #allocation3 [shape = 's32[2]{0}', space=sflag, size = 0x8, scoped, tag = 'scoped memory for tpu_custom_call.1']
    #allocation4 [shape = 's32[2]{0}', space=sflag, size = 0x8, scoped, tag = 'scoped memory for tpu_custom_call.1']
    #allocation5 [shape = 'u8[32768]{0}', space=vmem, size = 0x8000, scoped, tag = 'input window, operand 1']
    #allocation6 [shape = 's32[2]{0}', space=sflag, size = 0x8, scoped, tag = 'scoped memory for tpu_custom_call.1']
    #allocation7 [shape = 'u8[32768]{0}', space=vmem, size = 0x8000, scoped, tag = 'output window, operand 0']
    %7 = vsyncpa [#allocation3], 0
    %s8 = scalar_lea.sflag [#allocation3], 1
    %9 = vsyncpa %s8, 0
    %10 = vsyncpa [#allocation6], 0
    %s11 = scalar_lea.sflag [#allocation6], 1
    %12 = vsyncpa %s11, 0
    %13 = vsyncpa [#allocation4], 0
    %s14 = scalar_lea.sflag [#allocation4], 1
    %15 = vsyncpa %s14, 0
    loop: start=0, step=1, limit=4
    $region2: #{tpu_custom_call.1} parent=1 // loop_pre_header
      _
    $region3: #{tpu_custom_call.1} parent=1 // loop_header
      %s17 = sphi 0, %s21
      %p18 = scmp.ge.s32.totalorder %s17, 4
      %s27 = sphi 0, %s29
      %s30 = sphi 0, %s27
      %s31 = sphi 0, %s30
      %s47 = sphi 0, %s31
      %s53 = sphi 0, %s55
      %s56 = sphi 0, %s53
      %s57 = sphi 0, %s56
      %s73 = sphi 0, %s57
      %s79 = sphi 0, %s81
      %s82 = sphi 0, %s79
      %s83 = sphi 0, %s82
      %s99 = sphi 0, %s83
    $region4: #{tpu_custom_call.1} parent=1 // loop_header_branch
      %20 = sbr.rel (%p18) target = $region8
    $region5: #{tpu_custom_call.1} parent=1 // loop_body
      %s22 = ssub.s32 %s17, 1
      %s23 = ssub.s32 %s17, 2
      %s24 = sadd.s32 %s17, 1
      %s25 = ssub.s32 %s17, %s24
      %p26 = scmp.eq.s32.totalorder %s25, 0
      %s28 = sadd.s32 %s27, 1
      %s29 = scalar_select %p26, %s27, %s28
      %p32 = pneg %p26
      %p33 = scmp.eq.s32.totalorder %s17, 1
      %p34 = por %p32, %p33
      %p35 = scmp.ne.s32.totalorder %s27, %s30
      %p36 = scmp.eq.s32.totalorder %s17, 0
      %p37 = por %p35, %p36
      %p38 = scmp.ne.s32.totalorder %s27, %s30
      %p39 = scmp.eq.s32.totalorder %s22, 1
      %p40 = por %p38, %p39
      %p41 = scmp.ne.s32.totalorder %s30, %s31
      %p42 = scmp.eq.s32.totalorder %s22, 0
      %p43 = por %p41, %p42
      %p44 = scmp.ne.s32.totalorder %s30, %s31
      %p45 = scmp.eq.s32.totalorder %s23, 1
      %p46 = por %p44, %p45
      %p48 = scmp.ne.s32.totalorder %s31, %s47
      %p49 = scmp.eq.s32.totalorder %s23, 0
      %p50 = por %p48, %p49
      %s51 = ssub.s32 %s17, %s24
      %p52 = scmp.eq.s32.totalorder %s51, 0
      %s54 = sadd.s32 %s53, 1
      %s55 = scalar_select %p52, %s53, %s54
      %p58 = pneg %p52
      %p59 = scmp.eq.s32.totalorder %s17, 1
      %p60 = por %p58, %p59
      %p61 = scmp.ne.s32.totalorder %s53, %s56
      %p62 = scmp.eq.s32.totalorder %s17, 0
      %p63 = por %p61, %p62
      %p64 = scmp.ne.s32.totalorder %s53, %s56
      %p65 = scmp.eq.s32.totalorder %s22, 1
      %p66 = por %p64, %p65
      %p67 = scmp.ne.s32.totalorder %s56, %s57
      %p68 = scmp.eq.s32.totalorder %s22, 0
      %p69 = por %p67, %p68
      %p70 = scmp.ne.s32.totalorder %s56, %s57
      %p71 = scmp.eq.s32.totalorder %s23, 1
      %p72 = por %p70, %p71
      %p74 = scmp.ne.s32.totalorder %s57, %s73
      %p75 = scmp.eq.s32.totalorder %s23, 0
      %p76 = por %p74, %p75
      %s77 = ssub.s32 %s17, %s24
      %p78 = scmp.eq.s32.totalorder %s77, 0
      %s80 = sadd.s32 %s79, 1
      %s81 = scalar_select %p78, %s79, %s80
      %p84 = pneg %p78
      %p85 = scmp.eq.s32.totalorder %s17, 1
      %p86 = por %p84, %p85
      %p87 = scmp.ne.s32.totalorder %s79, %s82
      %p88 = scmp.eq.s32.totalorder %s17, 0
      %p89 = por %p87, %p88
      %p90 = scmp.ne.s32.totalorder %s79, %s82
      %p91 = scmp.eq.s32.totalorder %s22, 1
      %p92 = por %p90, %p91
      %p93 = scmp.ne.s32.totalorder %s82, %s83
      %p94 = scmp.eq.s32.totalorder %s22, 0
      %p95 = por %p93, %p94
      %p96 = scmp.ne.s32.totalorder %s82, %s83
      %p97 = scmp.eq.s32.totalorder %s23, 1
      %p98 = por %p96, %p97
      %p100 = scmp.ne.s32.totalorder %s83, %s99
      %p101 = scmp.eq.s32.totalorder %s23, 0
      %p102 = por %p100, %p101
      %p103 = scmp.le.s32.totalorder 1, %s17
      %p104 = scmp.lt.s32.totalorder %s17, 3
      %p105 = pnand %p103, %p104
      %p106 = pneg %p105
      // Predicated region
      $region9: #{tpu_custom_call.1} parent=5 // pred_check
        _
      $region10: #{tpu_custom_call.1} parent=5 // pred_check_branch
        %108 = sbr.rel (%p105) target = $region12
      $region11: #{tpu_custom_call.1} parent=5 // pred_region
        %s109 = ssub.s32 %s17, 1
      $region12: #{tpu_custom_call.1} parent=5 // pred_fallthru
        _
      %p110 = scmp.lt.s32.totalorder %s17, 2
      // Predicated region
      $region13: #{tpu_custom_call.1} parent=5 // pred_check
        %p111 = pneg %p110
      $region14: #{tpu_custom_call.1} parent=5 // pred_check_branch
        %113 = sbr.rel (%p111) target = $region16
      $region15: #{tpu_custom_call.1} parent=5 // pred_region
        // Predicated region
        $region17: #{tpu_custom_call.1} parent=15 // pred_check
          %p114 = pneg %p37
        $region18: #{tpu_custom_call.1} parent=15 // pred_check_branch
          %116 = sbr.rel (%p114) target = $region20
        $region19: #{tpu_custom_call.1} parent=15 // pred_region
          %s117 = sand.u32 %s27, 1
          %s118 = scalar_lea.sflag [#allocation3], %s117
          %s119 = sand.u32 %s27, 1
          %s120 = smul.addr %s119, 32
          %s121 = scalar_lea.vmem [#allocation2], %s120
          %s122 = smul.u32 4, %s17
          %s124 = ssub.s32 512, 512
          %125 = vsyncadd %s118, %s124
          %s126 = smul.addr %s122, 128
          %s127 = scalar_lea.hbm %s0, %s126
          %s128 = sshll.u32 %s121, 4
          %s129 = int_to_ptr.vmem [resolvable:$true] %s128
          %134 = dma.hbm_to_vmem [thread:$0]  %s127, 512, %s129, %s118, 128, 128, 8
        $region20: #{tpu_custom_call.1} parent=15 // pred_fallthru
          _
        // Predicated region
        $region21: #{tpu_custom_call.1} parent=15 // pred_check
          %p135 = pneg %p63
        $region22: #{tpu_custom_call.1} parent=15 // pred_check_branch
          %137 = sbr.rel (%p135) target = $region24
        $region23: #{tpu_custom_call.1} parent=15 // pred_region
          %s138 = sand.u32 %s53, 1
          %s139 = scalar_lea.sflag [#allocation6], %s138
          %s140 = sand.u32 %s53, 1
          %s141 = smul.addr %s140, 32
          %s142 = scalar_lea.vmem [#allocation5], %s141
          %s143 = smul.u32 4, %s17
          %s145 = ssub.s32 512, 512
          %146 = vsyncadd %s139, %s145
          %s147 = smul.addr %s143, 128
          %s148 = scalar_lea.hbm %s1, %s147
          %s149 = sshll.u32 %s142, 4
          %s150 = int_to_ptr.vmem [resolvable:$true] %s149
          %155 = dma.hbm_to_vmem [thread:$0]  %s148, 512, %s150, %s139, 128, 128, 8
        $region24: #{tpu_custom_call.1} parent=15 // pred_fallthru
          _
      $region16: #{tpu_custom_call.1} parent=5 // pred_fallthru
        _
      %p156 = scmp.le.s32.totalorder 1, %s17
      %p157 = scmp.lt.s32.totalorder %s17, 3
      %p158 = pnand %p156, %p157
      %p159 = pneg %p158
      // Predicated region
      $region25: #{tpu_custom_call.1} parent=5 // pred_check
        _
      $region26: #{tpu_custom_call.1} parent=5 // pred_check_branch
        %161 = sbr.rel (%p158) target = $region28
      $region27: #{tpu_custom_call.1} parent=5 // pred_region
        %s162 = ssub.s32 %s17, 1
        %s163 = sand.u32 %s30, 1
        %s164 = scalar_lea.sflag [#allocation3], %s163
        %s165 = sand.u32 %s30, 1
        %s166 = smul.addr %s165, 32
        %s167 = scalar_lea.vmem [#allocation2], %s166
        // Predicated region
        $region29: #{tpu_custom_call.1} parent=27 // pred_check
          %p168 = pneg %p43
        $region30: #{tpu_custom_call.1} parent=27 // pred_check_branch
          %170 = sbr.rel (%p168) target = $region32
        $region31: #{tpu_custom_call.1} parent=27 // pred_region
          %171 = dma.done %s164, 512
        $region32: #{tpu_custom_call.1} parent=27 // pred_fallthru
          _
        %s172 = sand.u32 %s56, 1
        %s173 = scalar_lea.sflag [#allocation6], %s172
        %s174 = sand.u32 %s56, 1
        %s175 = smul.addr %s174, 32
        %s176 = scalar_lea.vmem [#allocation5], %s175
        // Predicated region
        $region33: #{tpu_custom_call.1} parent=27 // pred_check
          %p177 = pneg %p69
        $region34: #{tpu_custom_call.1} parent=27 // pred_check_branch
          %179 = sbr.rel (%p177) target = $region36
        $region35: #{tpu_custom_call.1} parent=27 // pred_region
          %180 = dma.done %s173, 512
        $region36: #{tpu_custom_call.1} parent=27 // pred_fallthru
          _
        %s181 = sand.u32 %s30, 1
        %s182 = scalar_lea.sflag [#allocation3], %s181
        %s183 = sand.u32 %s30, 1
        %s184 = smul.addr %s183, 32
        %s185 = scalar_lea.vmem [#allocation2], %s184
        %p186 = pneg %p43
        %p187 = pneg %p40
        %s188 = sand.u32 %s56, 1
        %s189 = scalar_lea.sflag [#allocation6], %s188
        %s190 = sand.u32 %s56, 1
        %s191 = smul.addr %s190, 32
        %s192 = scalar_lea.vmem [#allocation5], %s191
        %p193 = pneg %p69
        %p194 = pneg %p66
        %p195 = pneg %p95
        %p196 = pneg %p92
        %s197 = sand.u32 %s82, 1
        %s198 = scalar_lea.sflag [#allocation4], %s197
        %s199 = sand.u32 %s82, 1
        %s200 = smul.addr %s199, 32
        %s201 = scalar_lea.vmem [#allocation7], %s200
        %s202 = smul.u32 4, %s22
        %s203 = smul.u32 4, %s22
        %s204 = smul.u32 4, %s22
        %v205 = vld [vmem:[%s167] sm:$0xff]
        %v206 = vld [vmem:[%s167 + $0x8] sm:$0xff]
        %v207 = vld [vmem:[%s167 + $0x10] sm:$0xff]
        %v208 = vld [vmem:[%s167 + $0x18] sm:$0xff]
        %v209 = vld [vmem:[%s176] sm:$0xff]
        %v210 = vld [vmem:[%s176 + $0x8] sm:$0xff]
        %v211 = vld [vmem:[%s176 + $0x10] sm:$0xff]
        %v212 = vld [vmem:[%s176 + $0x18] sm:$0xff]
        %v213 = vsub.f32 %v205, %v209
        %v214 = vsub.f32 %v206, %v210
        %v215 = vsub.f32 %v207, %v211
        %v216 = vsub.f32 %v208, %v212
        %v217 = vand.u32 2147483647, %v213
        %v218 = vand.u32 2147483647, %v214
        %v219 = vand.u32 2147483647, %v215
        %v220 = vand.u32 2147483647, %v216
        %221 = vadd.xlane.f32.xlu0 %v217
        %v222 = vpop.xlane.xlu0 %221
        %223 = vadd.xlane.f32.xlu0 %v218
        %v224 = vpop.xlane.xlu0 %223
        %225 = vadd.xlane.f32.xlu0 %v219
        %v226 = vpop.xlane.xlu0 %225
        %227 = vadd.xlane.f32.xlu0 %v220
        %v228 = vpop.xlane.xlu0 %227
        %v229 = vrcp.pop 128.0
        %v230 = vmul.f32 %v222, %v229
        %v231 = vmul.f32 %v224, %v229
        %v232 = vmul.f32 %v226, %v229
        %v233 = vmul.f32 %v228, %v229
        %vm234 = vcmp.gt.f32.partialorder %v230, 0.1
        %vm235 = vcmp.gt.f32.partialorder %v231, 0.1
        %vm236 = vcmp.gt.f32.partialorder %v232, 0.1
        %vm237 = vcmp.gt.f32.partialorder %v233, 0.1
        %v238 = vsel %vm234, 1, 0
        %v239 = vsel %vm235, 1, 0
        %v240 = vsel %vm236, 1, 0
        %v241 = vsel %vm237, 1, 0
        %v242 = vcvt.s32.f32 %v238
        %v243 = vcvt.s32.f32 %v239
        %v244 = vcvt.s32.f32 %v240
        %v245 = vcvt.s32.f32 %v241
        %246 = vst [vmem:[%s201] sm:$0xff] %v242
        %247 = vst [vmem:[%s201 + $0x8] sm:$0xff] %v243
        %248 = vst [vmem:[%s201 + $0x10] sm:$0xff] %v244
        %249 = vst [vmem:[%s201 + $0x18] sm:$0xff] %v245
        %s250 = sand.u32 %s82, 1
        %s251 = scalar_lea.sflag [#allocation4], %s250
        %s252 = sand.u32 %s82, 1
        %s253 = smul.addr %s252, 32
        %s254 = scalar_lea.vmem [#allocation7], %s253
        // Predicated region
        $region37: #{tpu_custom_call.1} parent=27 // pred_check
          %p255 = pneg %p92
        $region38: #{tpu_custom_call.1} parent=27 // pred_check_branch
          %257 = sbr.rel (%p255) target = $region40
        $region39: #{tpu_custom_call.1} parent=27 // pred_region
          %s258 = smul.u32 4, %s22
          %s260 = ssub.s32 512, 512
          %261 = vsyncadd %s251, %s260
          %s262 = smul.addr %s258, 128
          %s263 = scalar_lea.hbm %s2, %s262
          %s264 = sshll.u32 %s254, 4
          %s265 = int_to_ptr.vmem [resolvable:$true] %s264
          %270 = dma.vmem_to_hbm [thread:$0]  %s265, 512, %s263, %s251, 128, 128, 8
        $region40: #{tpu_custom_call.1} parent=27 // pred_fallthru
          _
      $region28: #{tpu_custom_call.1} parent=5 // pred_fallthru
        _
      %p271 = scmp.le.s32.totalorder 2, %s17
      // Predicated region
      $region41: #{tpu_custom_call.1} parent=5 // pred_check
        %p272 = pneg %p271
      $region42: #{tpu_custom_call.1} parent=5 // pred_check_branch
        %274 = sbr.rel (%p272) target = $region44
      $region43: #{tpu_custom_call.1} parent=5 // pred_region
        %s275 = ssub.s32 %s17, 2
        // Predicated region
        $region45: #{tpu_custom_call.1} parent=43 // pred_check
          %p276 = pneg %p98
        $region46: #{tpu_custom_call.1} parent=43 // pred_check_branch
          %278 = sbr.rel (%p276) target = $region48
        $region47: #{tpu_custom_call.1} parent=43 // pred_region
          %s279 = sand.u32 %s83, 1
          %s280 = scalar_lea.sflag [#allocation4], %s279
          %s281 = sand.u32 %s83, 1
          %s282 = smul.addr %s281, 32
          %s283 = scalar_lea.vmem [#allocation7], %s282
          %284 = dma.done %s280, 512
        $region48: #{tpu_custom_call.1} parent=43 // pred_fallthru
          _
      $region44: #{tpu_custom_call.1} parent=5 // pred_fallthru
        _
    $region6: #{tpu_custom_call.1} parent=1 // loop_footer
      %s21 = sadd.s32 1, %s17
    $region7: #{tpu_custom_call.1} parent=1 // loop_footer_branch
      %16 = sbr.rel target = $region3
    $region8: #{tpu_custom_call.1} parent=1 // loop_exit
      _
    %285 = vsyncpa [#allocation3], 1
    %s286 = scalar_lea.sflag [#allocation3], 1
    %287 = vsyncpa %s286, 1
    %288 = vsyncpa [#allocation6], 1
    %s289 = scalar_lea.sflag [#allocation6], 1
    %290 = vsyncpa %s289, 1
    %291 = vsyncpa [#allocation4], 1
    %s292 = scalar_lea.sflag [#allocation4], 1
    %293 = vsyncpa %s292, 1

</llo_original>
